<compile_context>
chip_gen: v5e
topology: v5e:2x2
jax: 0.10.0
libtpu: 0.0.40
codegen_flags: <defaults>
</compile_context>

<pallas_src>
import jax
import jax.numpy as jnp
from jax import lax
from jax.experimental import pallas as pl
from jax.experimental.pallas import tpu as pltpu


# pltpu.roll shift convention flag: True -> np.roll semantics (out[i] = x[i - shift]).
# __main__ probes this once, eagerly (outside any jit trace), so the im2col shift
# direction is robust to any convention difference across jax versions.
_ROLL_NP_CONVENTION = True


def _probe_roll_convention():
    def probe(x_ref, o_ref):
        o_ref[...] = pltpu.roll(x_ref[...], 1, axis=1)

    x = lax.broadcasted_iota(jnp.int32, (8, 128), 1)
    y = pl.pallas_call(probe, out_shape=jax.ShapeDtypeStruct((8, 128), jnp.int32))(x)
    return int(y[0, 0]) == 127          # np.roll(row, 1)[0] == 127


# --------------------------------------------------------------------------------------
# Fused kernel factory (N, Cin, Cout, H, W, eps are static Python values)
# --------------------------------------------------------------------------------------
def _make_kernel(N, Cin, Cout, H, W, eps):
    HW = H * W

    def kernel(x_ref, w_ref, gamma_ref, beta_ref, o_ref, cols_ref):
        # x_ref     : (N, Cin, HW) f32        w_ref : (Cout, 9*Cin) bf16
        # gamma/beta: (Cout, 1) f32           o_ref : (N, Cout, HW) f32
        # cols_ref  : (9*Cin, N*HW) bf16 VMEM scratch (im2col patch matrix)

        # Hoisted full-shape masks (no per-tap broadcast_in_dim inside the loops).
        flat = lax.broadcasted_iota(jnp.int32, (Cin, HW), 1)   # flat spatial index
        col = flat % W
        zero = jnp.zeros((Cin, HW), jnp.float32)
        col_ok_p = col != 0              # dx=+1 taps read SOURCE col 0 when OOB
        col_ok_m = col != (W - 1)        # dx=-1 taps read SOURCE col W-1 when OOB
        row_ok_dn = flat < (H - 1) * W   # dy=+1 taps: output row H-1 is OOB
        row_ok_up = flat >= W            # dy=-1 taps: output row 0 is OOB

        # ---- im2col: each 3x3 tap's row-block goes straight into the scratch -------
        for n in range(N):
            x = x_ref[n]                                        # (Cin, HW) f32
            src_by_dx = {                # column-masked sources, reused by 3 taps each
                -1: jnp.where(col_ok_m, x, zero),
                0: x,
                1: jnp.where(col_ok_p, x, zero),
            }
            for dy in (-1, 0, 1):
                for dx in (-1, 0, 1):
                    t = (dy + 1) * 3 + (dx + 1)
                    s = dy * W + dx                              # flat source shift
                    v = src_by_dx[dx]
                    if s != 0:
                        # want v'[:, i] == v[:, (i + s) % HW]
                        amt = ((-s) % HW) if _ROLL_NP_CONVENTION else (s % HW)
                        v = pltpu.roll(v, amt, axis=1)           # XLU lane rotate
                    if dy == 1:
                        v = jnp.where(row_ok_dn, v, zero)
                    elif dy == -1:
                        v = jnp.where(row_ok_up, v, zero)
                    cols_ref[pl.ds(t * Cin, Cin), pl.ds(n * HW, HW)] = (
                        v.astype(jnp.bfloat16))

        # ---- conv: ONE bf16 MXU matmul, K = 9*Cin, RHS width N*HW, f32 accumulate --
        y = jnp.dot(w_ref[...], cols_ref[...],
                    preferred_element_type=jnp.float32)          # (Cout, N*HW)

        # ---- BatchNorm (training batch stats, biased variance) + ReLU, all in VMEM -
        inv_cnt = jnp.float32(1.0 / (N * HW))
        mean = jnp.sum(y, axis=1, keepdims=True) * inv_cnt       # (Cout, 1)
        centered = y - mean
        var = jnp.sum(centered * centered, axis=1, keepdims=True) * inv_cnt
        scale = gamma_ref[...] * lax.rsqrt(var + eps)            # (Cout, 1)
        bias = beta_ref[...] - mean * scale
        out = jnp.maximum(y * scale + bias, 0.0)                 # (Cout, N*HW)

        for n in range(N):                                       # lane-dense stores
            o_ref[n] = out[:, n * HW:(n + 1) * HW].astype(o_ref.dtype)

    return kernel


# --------------------------------------------------------------------------------------
# Wrapper
# --------------------------------------------------------------------------------------
def msrepl_forward(x_nchw, w_oihw, gamma, beta, eps=1e-5):
    """x_nchw: (N, C, H, W) f32, w_oihw: (Cout, Cin, 3, 3) f32, gamma/beta: (Cout,)."""
    N, Cin, H, W = x_nchw.shape
    Cout = w_oihw.shape[0]
    HW = H * W

    # Free reshape (contiguous); no activation transpose / padding passes in HBM.
    x_flat = x_nchw.reshape(N, Cin, HW)
    # Tiny weight relayout: (Cout, Cin, 3, 3) -> (Cout, (dy, dx, ci)) bf16, matching
    # the im2col row ordering t*Cin + ci with t = (dy+1)*3 + (dx+1).
    w_r = jnp.transpose(w_oihw, (0, 2, 3, 1)).reshape(Cout, 9 * Cin).astype(jnp.bfloat16)

    kernel = _make_kernel(N, Cin, Cout, H, W, eps)

    out = pl.pallas_call(
        kernel,
        out_shape=jax.ShapeDtypeStruct((N, Cout, HW), jnp.float32),
        grid_spec=pltpu.PrefetchScalarGridSpec(
            num_scalar_prefetch=0,
            grid=(1,),
            in_specs=[
                pl.BlockSpec((N, Cin, HW), lambda i: (0, 0, 0)),
                pl.BlockSpec((Cout, 9 * Cin), lambda i: (0, 0)),
                pl.BlockSpec((Cout, 1), lambda i: (0, 0)),
                pl.BlockSpec((Cout, 1), lambda i: (0, 0)),
            ],
            out_specs=pl.BlockSpec((N, Cout, HW), lambda i: (0, 0, 0)),
            scratch_shapes=[pltpu.VMEM((9 * Cin, N * HW), jnp.bfloat16)],
        ),
        compiler_params=pltpu.CompilerParams(dimension_semantics=("arbitrary",)),
        cost_estimate=pl.CostEstimate(
            flops=2 * Cout * 9 * Cin * N * HW + 8 * Cout * N * HW,
            transcendentals=Cout,
            bytes_accessed=(x_flat.size * 4 + w_r.size * 2
                            + N * Cout * HW * 4 + 2 * Cout * 4),
        ),
    )(x_flat, w_r, gamma.reshape(Cout, 1), beta.reshape(Cout, 1))

    # Free reshape back to NCHW (kernel already wrote channel-major layout).
    return out.reshape(N, Cout, H, W)


# --------------------------------------------------------------------------------------
# Pure-JAX reference (same bf16-multiplicand / f32-accumulate precision as the kernel)
# --------------------------------------------------------------------------------------
def msrepl_reference(x_nchw, w_oihw, gamma, beta, eps=1e-5):
    y = lax.conv_general_dilated(
        x_nchw.astype(jnp.bfloat16), w_oihw.astype(jnp.bfloat16),
        window_strides=(1, 1), padding=((1, 1), (1, 1)),
        dimension_numbers=("NCHW", "OIHW", "NCHW"),
        preferred_element_type=jnp.float32)
    mean = jnp.mean(y, axis=(0, 2, 3), keepdims=True)
    var = jnp.mean((y - mean) ** 2, axis=(0, 2, 3), keepdims=True)   # biased var
    yn = (y - mean) * lax.rsqrt(var + eps)
    yn = yn * gamma.reshape(1, -1, 1, 1) + beta.reshape(1, -1, 1, 1)
    return jnp.maximum(yn, 0.0)


if __name__ == "__main__":
    # Module default channels=64; small batch / spatial.
    N, C, H, W = 2, 64, 16, 16

    # Resolve pltpu.roll's shift convention once, eagerly, before any jit tracing.
    _ROLL_NP_CONVENTION = _probe_roll_convention()

    key = jax.random.PRNGKey(0)
    kx, kw, kg, kb = jax.random.split(key, 4)

    x = jax.random.normal(kx, (N, C, H, W), dtype=jnp.float32)
    # Conv2d(C, C, 3, padding=1, bias=False) weight: (Cout, Cin, 3, 3)
    conv_w = jax.random.normal(kw, (C, C, 3, 3), dtype=jnp.float32) * 0.1
    # BatchNorm2d affine params (non-trivial values to exercise the affine path).
    gamma = 1.0 + 0.1 * jax.random.normal(kg, (C,), dtype=jnp.float32)
    beta = 0.1 * jax.random.normal(kb, (C,), dtype=jnp.float32)

    out = jax.block_until_ready(jax.jit(msrepl_forward)(x, conv_w, gamma, beta))
    ref = msrepl_reference(x, conv_w, gamma, beta)

    assert out.shape == (N, C, H, W)
    max_err = float(jnp.max(jnp.abs(out - ref)))
    assert jnp.allclose(out, ref, atol=2e-3, rtol=2e-3), max_err

    print("KERNEL_OK")
</pallas_src>

<mosaic_0001>
module attributes {stable_mosaic.version = 11 : i64} {
  func.func @probe(%arg0: memref<8x128xi32, #tpu.memory_space<vmem>>, %arg1: memref<8x128xi32, #tpu.memory_space<vmem>>) attributes {dimension_semantics = [], scalar_prefetch = 0 : i64, scratch_operands = 0 : i64, tpu.core_type = #tpu.core_type<tc>} {
    %c0 = arith.constant 0 : index
    %c0_0 = arith.constant 0 : index
    %0 = vector.load %arg0[%c0, %c0_0] : memref<8x128xi32, #tpu.memory_space<vmem>>, vector<8x128xi32>
    %c1_i32 = arith.constant 1 : i32
    %1 = tpu.dynamic_rotate %0 by %c1_i32 dim 1 : vector<8x128xi32>, i32 -> vector<8x128xi32>
    %c0_1 = arith.constant 0 : index
    %c0_2 = arith.constant 0 : index
    %2 = vector.load %arg1[%c0_1, %c0_2] : memref<8x128xi32, #tpu.memory_space<vmem>>, vector<8x128xi32>
    tpu.vector_store %arg1[%c0_1, %c0_2], %1 {strides = array<i32>} : memref<8x128xi32, #tpu.memory_space<vmem>>, vector<8x128xi32>,
    return
  }
}

</mosaic_0001>

<llo_original>
// kernel: tpu_custom_call.1
$region0: #{tpu_custom_call.1}
  #allocation0 [shape = 'u32[]', space=smem, size = 0x4, offset = 0x4, fixed_abs, tag = 'smem constant byte address 0x4 - core index']
  #allocation1 [shape = 'u32[72,128]{1,0:T(1,128)}', space=vmem, size = 0x9000, scoped, tag = 'internal scratch']
  %s0 = inlined_call_operand.hbm [shape: s32[8,128], index: 0, kind: input, shape index: {}]
  %s1 = inlined_call_operand.hbm [shape: s32[8,128], index: 1, kind: output, shape index: {}]
  %s2 = sld [smem:[#allocation0]]
  $region18: #{tpu_custom_call.1} parent=0
    _
  %s4 = ssub.s32 1, %s2
  %s5 = scalar_select 0, %s4, %s2
  $region1: #{tpu_custom_call.1} parent=0
    #allocation2 [shape = 'u8[4096]{0}', space=vmem, size = 0x1000, scoped, tag = 'input window, operand 0, single buffered']
    #allocation3 [shape = 's32[1]{0}', space=sflag, size = 0x4, scoped, tag = 'scoped memory for tpu_custom_call.1']
    #allocation4 [shape = 's32[1]{0}', space=sflag, size = 0x4, scoped, tag = 'scoped memory for tpu_custom_call.1']
    #allocation5 [shape = 'u8[4096]{0}', space=vmem, size = 0x1000, scoped, tag = 'output window, operand 0, single buffered']
    %6 = vsyncpa [#allocation3], 0
    %7 = vsyncpa [#allocation4], 0
    // Predicated region
    $region2: #{tpu_custom_call.1} parent=1 // pred_check
      _
    $region3: #{tpu_custom_call.1} parent=1 // pred_check_branch
      %9 = sbr.rel (0) target = $region5
    $region4: #{tpu_custom_call.1} parent=1 // pred_region
      %11 = vsyncadd [#allocation3], 0
      %s13 = sshll.u32 %s0, 4
      %s14 = int_to_ptr.hbm [resolvable:$true] %s13
      %s15 = sshll.u32 [#allocation2], 4
      %s16 = int_to_ptr.vmem [resolvable:$true] %s15
      %18 = dma.hbm_to_vmem [thread:$0]  %s14, 128, %s16, [#allocation3]
    $region5: #{tpu_custom_call.1} parent=1 // pred_fallthru
      _
    // Predicated region
    $region6: #{tpu_custom_call.1} parent=1 // pred_check
      _
    $region7: #{tpu_custom_call.1} parent=1 // pred_check_branch
      %20 = sbr.rel (0) target = $region9
    $region8: #{tpu_custom_call.1} parent=1 // pred_region
      %22 = dma.done [#allocation3], 128
    $region9: #{tpu_custom_call.1} parent=1 // pred_fallthru
      _
    %v23 = vld [vmem:[#allocation2] sm:$0xff]
    %24 = vrot.lane.b32.xlu0 %v23, 1
    %v25 = vpop.permute.xlu0 %24
    %26 = vst [vmem:[#allocation5] sm:$0xff] %v25
    // Predicated region
    $region10: #{tpu_custom_call.1} parent=1 // pred_check
      _
    $region11: #{tpu_custom_call.1} parent=1 // pred_check_branch
      %28 = sbr.rel (0) target = $region13
    $region12: #{tpu_custom_call.1} parent=1 // pred_region
      %30 = vsyncadd [#allocation4], 0
      %s32 = sshll.u32 [#allocation5], 4
      %s33 = int_to_ptr.vmem [resolvable:$true] %s32
      %s34 = sshll.u32 %s1, 4
      %s35 = int_to_ptr.hbm [resolvable:$true] %s34
      %37 = dma.vmem_to_hbm [thread:$0]  %s33, 128, %s35, [#allocation4]
    $region13: #{tpu_custom_call.1} parent=1 // pred_fallthru
      _
    // Predicated region
    $region14: #{tpu_custom_call.1} parent=1 // pred_check
      _
    $region15: #{tpu_custom_call.1} parent=1 // pred_check_branch
      %39 = sbr.rel (0) target = $region17
    $region16: #{tpu_custom_call.1} parent=1 // pred_region
      %41 = dma.done [#allocation4], 128
    $region17: #{tpu_custom_call.1} parent=1 // pred_fallthru
      _
    %42 = vsyncpa [#allocation3], 1
    %43 = vsyncpa [#allocation4], 1

</llo_original>
